<compile_context>
chip_gen: v5e
topology: v5e:2x2
jax: 0.10.0
libtpu: 0.0.40
codegen_flags: <defaults>
</compile_context>

<pallas_src>
import jax
import jax.numpy as jnp
from jax import lax
from jax.experimental import pallas as pl
from jax.experimental.pallas import tpu as pltpu


def _round_up(v, m):
    return ((v + m - 1) // m) * m


def _vmem_budget_bytes():
    """Per-generation VMEM budget with headroom (v5e/v6e ~100 MiB, v7x ~51 MiB)."""
    try:
        cap = int(pltpu.get_tpu_info().vmem_capacity_bytes)
    except Exception:
        cap = 64 << 20
    return max(16 << 20, min(int(cap * 0.8), cap - (8 << 20)))


def _bilinear_fused_kernel(x_ref, w_ref, yt_ref, o_ref, xt_ref):
    # x_ref: (tm, Kx), w_ref: (Ky, Kx), yt_ref: (Ky, tn), o_ref: (tm, tn)
    # xt_ref: (tm, Ky) scratch in the compute dtype, persists across the j (N) axis.

    # Hoist the first matmul out of the N loop: compute once per M-tile.
    @pl.when(pl.program_id(1) == 0)
    def _():
        xt_ref[...] = lax.dot_general(
            x_ref[...], w_ref[...],
            dimension_numbers=(((1,), (1,)), ((), ())),   # contract x_dim vs x_dim
            preferred_element_type=jnp.float32,
        ).astype(xt_ref.dtype)

    # Second matmul: (tm, Ky) . (Ky, tn) in MXU-native orientation, f32 accumulation.
    o_ref[...] = lax.dot_general(
        xt_ref[...], yt_ref[...],
        dimension_numbers=(((1,), (0,)), ((), ())),
        preferred_element_type=jnp.float32,
    ).astype(o_ref.dtype)


def _bilinear_xt_kernel(xt_ref, yt_ref, o_ref):
    # Precomputed-xt path: simple (tm, Ky) . (Ky, tn) tile matmul, both axes parallel.
    o_ref[...] = lax.dot_general(
        xt_ref[...], yt_ref[...],
        dimension_numbers=(((1,), (0,)), ((), ())),
        preferred_element_type=jnp.float32,
    ).astype(o_ref.dtype)


def bilinear_comparator(x, y, weight, *, tm_target=1024, tn_target=512,
                        out_dtype=None, precompute_xt=None):
    """Pallas implementation of BilinearComparator.forward.

    x: (B, T, x_dim) or (B, x_dim)
    y: (B, T, y_dim) or (B, y_dim)
    weight: (y_dim, x_dim)   -- torch.nn.Linear weight layout
    out_dtype: optional override (e.g. bf16) to halve output HBM writeback traffic.
    precompute_xt: force/disable the externally-precomputed xt path (None = auto).
    """
    if x.ndim != y.ndim:
        raise ValueError("Input rank mismatch: {} != {}".format(x.ndim, y.ndim))
    if x.ndim not in (2, 3):
        raise ValueError("Inputs must be (batch, dim) or (batch, time, dim)")
    has_time = x.ndim == 3
    if has_time and x.shape[1] != y.shape[1]:
        raise ValueError("Time dimension mismatch: {} != {}".format(x.shape[1], y.shape[1]))

    x_dim = x.shape[-1]
    y_dim = y.shape[-1]
    if weight.shape != (y_dim, x_dim):
        raise ValueError("weight must be (y_dim, x_dim) = ({}, {})".format(y_dim, x_dim))
    input_x_shape = x.shape

    # MXU operand dtype: native bf16 stays bf16 (f32 accumulation in-kernel).
    cdt = jnp.result_type(x.dtype, y.dtype, weight.dtype)
    if out_dtype is None:
        out_dtype = cdt
    in_item = jnp.dtype(cdt).itemsize
    out_item = jnp.dtype(out_dtype).itemsize
    m_align = max(8, 32 // in_item)       # 8 (f32), 16 (bf16), 32 (int8/fp8) sublane packing

    x2 = x.reshape(-1, x_dim).astype(cdt)   # (M, x_dim)
    y2 = y.reshape(-1, y_dim).astype(cdt)   # (N, y_dim)
    w = weight.astype(cdt)                  # (y_dim, x_dim)
    M, N = x2.shape[0], y2.shape[0]

    # Pad feature dims to lane-dense multiples of 128 (padded zeros contract to zero).
    Kx = _round_up(x_dim, 128)
    Ky = _round_up(y_dim, 128)

    budget = _vmem_budget_bytes()
    w_bytes = Ky * Kx * in_item
    if precompute_xt is None:
        # Large resident W (esp. on v7x's 64 MiB VMEM): precompute xt outside the kernel.
        precompute_xt = w_bytes > min(16 << 20, budget // 4)
    fused = not precompute_xt

    # ---- tile selection: keep tm big (Y is re-streamed once per M-tile), shrink tn first ----
    tm = _round_up(min(tm_target, _round_up(M, m_align)), m_align)
    tn = _round_up(min(tn_target, _round_up(N, 128)), 128)

    def tile_bytes(tm_, tn_):
        b = 2 * Ky * tn_ * in_item + 2 * tm_ * tn_ * out_item   # Y tiles + output tiles
        if fused:
            b += 2 * tm_ * Kx * in_item     # X tiles (double-buffered)
            b += 2 * w_bytes                # W (conservative: assume double-buffered)
            b += tm_ * Ky * in_item         # xt scratch
        else:
            b += 2 * tm_ * Ky * in_item     # precomputed-xt tiles (double-buffered)
        return b

    while tile_bytes(tm, tn) > (budget * 9) // 10 and (tm > m_align or tn > 128):
        if tn > 128:
            tn = max(128, _round_up(tn // 2, 128))
        else:
            tm = max(m_align, _round_up(tm // 2, m_align))

    # Keep >= 2 M tiles when M is large so the "parallel" axis feeds both v7x TensorCores.
    if tm >= _round_up(M, m_align) and M >= 512:
        tm = _round_up(-(-M // 2), m_align)

    Mp = _round_up(M, tm)
    Np = _round_up(N, tn)
    grid = (Mp // tm, Np // tn)

    # ---- operand prep: pad to tile/lane multiples; transpose Y once to (Ky, Np) ----
    if fused:
        a = jnp.pad(x2, ((0, Mp - M), (0, Kx - x_dim)))           # (Mp, Kx)
        w_p = jnp.pad(w, ((0, Ky - y_dim), (0, Kx - x_dim)))      # (Ky, Kx)
    else:
        # xt = x @ W.T done once by XLA, stored in the compute dtype (same rounding as
        # the fused path's scratch).
        xt = lax.dot_general(x2, w, (((1,), (1,)), ((), ())),
                             precision=lax.Precision.HIGHEST,
                             preferred_element_type=jnp.float32).astype(cdt)
        a = jnp.pad(xt, ((0, Mp - M), (0, Ky - y_dim)))           # (Mp, Ky)
        w_p = None
    y2t = jnp.pad(y2, ((0, Np - N), (0, Ky - y_dim))).T           # (Ky, Np), lane-dense

    vmem_limit = int(min(budget, max(2 * tile_bytes(tm, tn), 16 << 20)))

    if fused:
        flops = 2 * Mp * Kx * Ky + 2 * Mp * Np * Ky
        bytes_accessed = (in_item * (Mp * Kx + Ky * Kx + grid[0] * Np * Ky)
                          + out_item * Mp * Np)
    else:
        flops = 2 * Mp * Np * Ky
        bytes_accessed = in_item * (Mp * Ky + grid[0] * Np * Ky) + out_item * Mp * Np
    cost = pl.CostEstimate(flops=int(flops), transcendentals=0,
                           bytes_accessed=int(bytes_accessed))

    out_shape = jax.ShapeDtypeStruct((Mp, Np), out_dtype)
    out_spec = pl.BlockSpec((tm, tn), lambda i, j: (i, j))
    yt_spec = pl.BlockSpec((Ky, tn), lambda i, j: (0, j))

    def call(w_single_buffered):
        if fused:
            if w_single_buffered:
                # W's block index never changes; single-buffering halves its VMEM footprint.
                w_spec = pl.BlockSpec((Ky, Kx), lambda i, j: (0, 0),
                                      pipeline_mode=pl.Buffered(1))
            else:
                w_spec = pl.BlockSpec((Ky, Kx), lambda i, j: (0, 0))
            grid_spec = pltpu.PrefetchScalarGridSpec(
                num_scalar_prefetch=0, grid=grid,
                in_specs=[pl.BlockSpec((tm, Kx), lambda i, j: (i, 0)),   # X tile
                          w_spec,                                        # W resident
                          yt_spec],                                      # Y^T tile
                out_specs=out_spec,
                scratch_shapes=[pltpu.VMEM((tm, Ky), cdt)])
            kernel = _bilinear_fused_kernel
            operands = (a, w_p, y2t)
            # j carries the hoisted xt scratch -> must stay "arbitrary".
            dims = ("parallel", "arbitrary")
        else:
            grid_spec = pltpu.PrefetchScalarGridSpec(
                num_scalar_prefetch=0, grid=grid,
                in_specs=[pl.BlockSpec((tm, Ky), lambda i, j: (i, 0)),   # xt tile
                          yt_spec],
                out_specs=out_spec,
                scratch_shapes=[])
            kernel = _bilinear_xt_kernel
            operands = (a, y2t)
            dims = ("parallel", "parallel")
        return pl.pallas_call(
            kernel,
            out_shape=out_shape,
            grid_spec=grid_spec,
            compiler_params=pltpu.CompilerParams(
                dimension_semantics=dims,
                vmem_limit_bytes=vmem_limit),
            cost_estimate=cost,
        )(*operands)

    if fused:
        try:
            out = call(True)
        except Exception:
            # Runtime without pipeline_mode / Buffered(1) support: default double-buffered W.
            out = call(False)
    else:
        out = call(False)

    out = out[:M, :N]
    if has_time:
        batch_size, duration = input_x_shape[:2]
        out = out.reshape(batch_size, duration, batch_size, duration)
    return out


if __name__ == "__main__":
    # Small deterministic example: batch=2, time=8, x_dim=32, y_dim=32.
    B, T, X_DIM, Y_DIM = 2, 8, 32, 32
    key = jax.random.PRNGKey(0)
    kx, ky, kw = jax.random.split(key, 3)

    x = jax.random.normal(kx, (B, T, X_DIM), dtype=jnp.float32)
    y = jax.random.normal(ky, (B, T, Y_DIM), dtype=jnp.float32)
    bound = 1.0 / (X_DIM ** 0.5)
    weight = jax.random.uniform(
        kw, (Y_DIM, X_DIM), dtype=jnp.float32, minval=-bound, maxval=bound
    )

    hi = lax.Precision.HIGHEST

    # Fused path (default).
    out = jax.block_until_ready(bilinear_comparator(x, y, weight))
    assert out.shape == (B, T, B, T), out.shape
    xt_ref = jnp.einsum("btd,ed->bte", x, weight, precision=hi).reshape(-1, Y_DIM)
    ref = jnp.dot(xt_ref, y.reshape(-1, Y_DIM).T, precision=hi).reshape(B, T, B, T)
    assert jnp.allclose(out, ref, atol=1e-4, rtol=1e-4)

    # Precomputed-xt path (used automatically when W is a large VMEM resident, e.g. v7x).
    out_pc = jax.block_until_ready(bilinear_comparator(x, y, weight, precompute_xt=True))
    assert jnp.allclose(out_pc, ref, atol=1e-4, rtol=1e-4)

    # No-time (B, dim) path.
    out2 = jax.block_until_ready(bilinear_comparator(x[:, 0, :], y[:, 0, :], weight))
    ref2 = jnp.dot(jnp.dot(x[:, 0, :], weight.T, precision=hi), y[:, 0, :].T, precision=hi)
    assert out2.shape == (B, B)
    assert jnp.allclose(out2, ref2, atol=1e-4, rtol=1e-4)

    # bf16 fast path: native MXU dtype, f32 accumulation (looser tolerance vs f32 math).
    xb, yb, wb = (x.astype(jnp.bfloat16), y.astype(jnp.bfloat16), weight.astype(jnp.bfloat16))
    out_bf = jax.block_until_ready(bilinear_comparator(xb, yb, wb))
    assert out_bf.dtype == jnp.bfloat16
    xt_bf = jnp.dot(xb.astype(jnp.float32).reshape(-1, X_DIM),
                    wb.astype(jnp.float32).T, precision=hi)
    ref_bf = jnp.dot(xt_bf, yb.astype(jnp.float32).reshape(-1, Y_DIM).T, precision=hi)
    assert jnp.allclose(out_bf.astype(jnp.float32).reshape(B * T, B * T),
                        ref_bf, atol=0.3, rtol=0.08)

    print("KERNEL_OK")
</pallas_src>

<mosaic_0001>
module attributes {stable_mosaic.version = 11 : i64} {
  func.func @_bilinear_fused_kernel(%arg0: i32, %arg1: i32, %arg2: memref<16x128xf32, #tpu.memory_space<vmem>>, %arg3: memref<128x128xf32, #tpu.memory_space<vmem>>, %arg4: memref<128x128xf32, #tpu.memory_space<vmem>>, %arg5: memref<16x128xf32, #tpu.memory_space<vmem>>, %arg6: memref<16x128xf32, #tpu.memory_space<vmem>>) attributes {dimension_semantics = [#tpu.dimension_semantics<parallel>, #tpu.dimension_semantics<arbitrary>], iteration_bounds = array<i64: 1, 1>, scalar_prefetch = 0 : i64, scratch_operands = 1 : i64, tpu.core_type = #tpu.core_type<tc>, window_params = [{transform_indices = @transform_0, window_bounds = array<i64: 16, 128>}, {pipeline_mode = #tpu.pipeline_mode<synchronous>, transform_indices = @transform_1, window_bounds = array<i64: 128, 128>}, {transform_indices = @transform_2, window_bounds = array<i64: 128, 128>}, {transform_indices = @transform_3, window_bounds = array<i64: 16, 128>}]} {
    %c0_i32 = arith.constant 0 : i32
    %0 = arith.cmpi eq, %arg1, %c0_i32 : i32
    %1 = arith.extui %0 : i1 to i32
    %c0_i32_0 = arith.constant 0 : i32
    %2 = arith.cmpi ne, %1, %c0_i32_0 : i32
    scf.if %2 {
      %c0_6 = arith.constant 0 : index
      %c0_7 = arith.constant 0 : index
      %7 = vector.load %arg2[%c0_6, %c0_7] : memref<16x128xf32, #tpu.memory_space<vmem>>, vector<16x128xf32>
      %c0_8 = arith.constant 0 : index
      %c0_9 = arith.constant 0 : index
      %8 = vector.load %arg3[%c0_8, %c0_9] : memref<128x128xf32, #tpu.memory_space<vmem>>, vector<128x128xf32>
      %cst_10 = arith.constant dense<0.000000e+00> : vector<16x128xf32>
      %9 = tpu.matmul %7, %8, %cst_10 {dimension_numbers = #tpu.dot_dimension_numbers<[1], [1], [0], [0], [0, 0, 1, 0], [], []>} : vector<16x128xf32>, vector<128x128xf32>, vector<16x128xf32> -> vector<16x128xf32>
      %c0_11 = arith.constant 0 : index
      %c0_12 = arith.constant 0 : index
      %10 = vector.load %arg6[%c0_11, %c0_12] : memref<16x128xf32, #tpu.memory_space<vmem>>, vector<16x128xf32>
      tpu.vector_store %arg6[%c0_11, %c0_12], %9 {strides = array<i32>} : memref<16x128xf32, #tpu.memory_space<vmem>>, vector<16x128xf32>,
    } else {
    }
    %c0 = arith.constant 0 : index
    %c0_1 = arith.constant 0 : index
    %3 = vector.load %arg6[%c0, %c0_1] : memref<16x128xf32, #tpu.memory_space<vmem>>, vector<16x128xf32>
    %c0_2 = arith.constant 0 : index
    %c0_3 = arith.constant 0 : index
    %4 = vector.load %arg4[%c0_2, %c0_3] : memref<128x128xf32, #tpu.memory_space<vmem>>, vector<128x128xf32>
    %cst = arith.constant dense<0.000000e+00> : vector<16x128xf32>
    %5 = tpu.matmul %3, %4, %cst {dimension_numbers = #tpu.dot_dimension_numbers<[1], [0], [0], [1], [0, 0, 1, 1], [], []>} : vector<16x128xf32>, vector<128x128xf32>, vector<16x128xf32> -> vector<16x128xf32>
    %c0_4 = arith.constant 0 : index
    %c0_5 = arith.constant 0 : index
    %6 = vector.load %arg5[%c0_4, %c0_5] : memref<16x128xf32, #tpu.memory_space<vmem>>, vector<16x128xf32>
    tpu.vector_store %arg5[%c0_4, %c0_5], %5 {strides = array<i32>} : memref<16x128xf32, #tpu.memory_space<vmem>>, vector<16x128xf32>,
    return
  }
  func.func @transform_0(%arg0: i32, %arg1: i32) -> (i32, i32) {
    %c0_i32 = arith.constant 0 : i32
    %c0_i32_0 = arith.constant 0 : i32
    return %arg0, %c0_i32 : i32, i32
  }
  func.func @transform_1(%arg0: i32, %arg1: i32) -> (i32, i32) {
    %c0_i32 = arith.constant 0 : i32
    %c0_i32_0 = arith.constant 0 : i32
    %c0_i32_1 = arith.constant 0 : i32
    return %c0_i32, %c0_i32_0 : i32, i32
  }
  func.func @transform_2(%arg0: i32, %arg1: i32) -> (i32, i32) {
    %c0_i32 = arith.constant 0 : i32
    %c0_i32_0 = arith.constant 0 : i32
    return %c0_i32, %arg1 : i32, i32
  }
  func.func @transform_3(%arg0: i32, %arg1: i32) -> (i32, i32) {
    %c0_i32 = arith.constant 0 : i32
    return %arg0, %arg1 : i32, i32
  }
}

module attributes {stable_mosaic.version = 11 : i64} {
  func.func @_bilinear_fused_kernel(%arg0: i32, %arg1: i32, %arg2: memref<16x128xf32, #tpu.memory_space<vmem>>, %arg3: memref<128x128xf32, #tpu.memory_space<vmem>>, %arg4: memref<128x128xf32, #tpu.memory_space<vmem>>, %arg5: memref<16x128xf32, #tpu.memory_space<vmem>>, %arg6: memref<16x128xf32, #tpu.memory_space<vmem>>) attributes {dimension_semantics = [#tpu.dimension_semantics<parallel>, #tpu.dimension_semantics<arbitrary>], iteration_bounds = array<i64: 1, 1>, scalar_prefetch = 0 : i64, scratch_operands = 1 : i64, tpu.core_type = #tpu.core_type<tc>, window_params = [{transform_indices = @transform_0, window_bounds = array<i64: 16, 128>}, {pipeline_mode = #tpu.pipeline_mode<synchronous>, transform_indices = @transform_1, window_bounds = array<i64: 128, 128>}, {transform_indices = @transform_2, window_bounds = array<i64: 128, 128>}, {transform_indices = @transform_3, window_bounds = array<i64: 16, 128>}]} {
    %c0_i32 = arith.constant 0 : i32
    %0 = arith.cmpi eq, %arg1, %c0_i32 : i32
    %1 = arith.extui %0 : i1 to i32
    %c0_i32_0 = arith.constant 0 : i32
    %2 = arith.cmpi ne, %1, %c0_i32_0 : i32
    scf.if %2 {
      %c0_6 = arith.constant 0 : index
      %c0_7 = arith.constant 0 : index
      %7 = vector.load %arg2[%c0_6, %c0_7] : memref<16x128xf32, #tpu.memory_space<vmem>>, vector<16x128xf32>
      %c0_8 = arith.constant 0 : index
      %c0_9 = arith.constant 0 : index
      %8 = vector.load %arg3[%c0_8, %c0_9] : memref<128x128xf32, #tpu.memory_space<vmem>>, vector<128x128xf32>
      %cst_10 = arith.constant dense<0.000000e+00> : vector<16x128xf32>
      %9 = tpu.matmul %7, %8, %cst_10 {dimension_numbers = #tpu.dot_dimension_numbers<[1], [1], [0], [0], [0, 0, 1, 0], [], []>} : vector<16x128xf32>, vector<128x128xf32>, vector<16x128xf32> -> vector<16x128xf32>
      %c0_11 = arith.constant 0 : index
      %c0_12 = arith.constant 0 : index
      %10 = vector.load %arg6[%c0_11, %c0_12] : memref<16x128xf32, #tpu.memory_space<vmem>>, vector<16x128xf32>
      tpu.vector_store %arg6[%c0_11, %c0_12], %9 {strides = array<i32>} : memref<16x128xf32, #tpu.memory_space<vmem>>, vector<16x128xf32>,
    } else {
    }
    %c0 = arith.constant 0 : index
    %c0_1 = arith.constant 0 : index
    %3 = vector.load %arg6[%c0, %c0_1] : memref<16x128xf32, #tpu.memory_space<vmem>>, vector<16x128xf32>
    %c0_2 = arith.constant 0 : index
    %c0_3 = arith.constant 0 : index
    %4 = vector.load %arg4[%c0_2, %c0_3] : memref<128x128xf32, #tpu.memory_space<vmem>>, vector<128x128xf32>
    %cst = arith.constant dense<0.000000e+00> : vector<16x128xf32>
    %5 = tpu.matmul %3, %4, %cst {dimension_numbers = #tpu.dot_dimension_numbers<[1], [0], [0], [1], [0, 0, 1, 1], [], []>} : vector<16x128xf32>, vector<128x128xf32>, vector<16x128xf32> -> vector<16x128xf32>
    %c0_4 = arith.constant 0 : index
    %c0_5 = arith.constant 0 : index
    %6 = vector.load %arg5[%c0_4, %c0_5] : memref<16x128xf32, #tpu.memory_space<vmem>>, vector<16x128xf32>
    tpu.vector_store %arg5[%c0_4, %c0_5], %5 {strides = array<i32>} : memref<16x128xf32, #tpu.memory_space<vmem>>, vector<16x128xf32>,
    return
  }
  func.func @transform_0(%arg0: i32, %arg1: i32) -> (i32, i32) {
    %c0_i32 = arith.constant 0 : i32
    %c0_i32_0 = arith.constant 0 : i32
    return %arg0, %c0_i32 : i32, i32
  }
  func.func @transform_1(%arg0: i32, %arg1: i32) -> (i32, i32) {
    %c0_i32 = arith.constant 0 : i32
    %c0_i32_0 = arith.constant 0 : i32
    %c0_i32_1 = arith.constant 0 : i32
    return %c0_i32, %c0_i32_0 : i32, i32
  }
  func.func @transform_2(%arg0: i32, %arg1: i32) -> (i32, i32) {
    %c0_i32 = arith.constant 0 : i32
    %c0_i32_0 = arith.constant 0 : i32
    return %c0_i32, %arg1 : i32, i32
  }
  func.func @transform_3(%arg0: i32, %arg1: i32) -> (i32, i32) {
    %c0_i32 = arith.constant 0 : i32
    return %arg0, %arg1 : i32, i32
  }
}

</mosaic_0001>

<llo_original>
// kernel: tpu_custom_call.1
$region0: #{tpu_custom_call.1}
  #allocation0 [shape = 'u32[]', space=smem, size = 0x4, offset = 0x4, fixed_abs, tag = 'smem constant byte address 0x4 - core index']
  #allocation1 [shape = 'u32[72,128]{1,0:T(1,128)}', space=vmem, size = 0x9000, scoped, tag = 'internal scratch']
  #allocation2 [shape = 'f32[16,128]{1,0:T(8,128)}', space=vmem, size = 0x2000, scoped, tag = 'scratch operand']
  %s0 = inlined_call_operand.hbm [shape: f32[16,128], index: 0, kind: input, shape index: {}]
  %s1 = inlined_call_operand.hbm [shape: f32[128,128], index: 1, kind: input, shape index: {}]
  %s2 = inlined_call_operand.hbm [shape: f32[128,128], index: 2, kind: input, shape index: {}]
  %s3 = inlined_call_operand.hbm [shape: f32[16,128], index: 3, kind: output, shape index: {}]
  %s4 = sld [smem:[#allocation0]]
  $region38: #{tpu_custom_call.1} parent=0
    _
  %s6 = ssub.s32 1, %s4
  %s7 = scalar_select 0, %s6, %s4
  $region1: #{tpu_custom_call.1} parent=0
    #allocation3 [shape = 'u8[8192]{0}', space=vmem, size = 0x2000, scoped, tag = 'input window, operand 0, single buffered']
    #allocation4 [shape = 's32[1]{0}', space=sflag, size = 0x4, scoped, tag = 'scoped memory for tpu_custom_call.1']
    #allocation5 [shape = 's32[1]{0}', space=sflag, size = 0x4, scoped, tag = 'scoped memory for tpu_custom_call.1']
    #allocation6 [shape = 'u8[65536]{0}', space=vmem, size = 0x10000, scoped, tag = 'input window, operand 1, single buffered']
    #allocation7 [shape = 's32[1]{0}', space=sflag, size = 0x4, scoped, tag = 'scoped memory for tpu_custom_call.1']
    #allocation8 [shape = 'u8[65536]{0}', space=vmem, size = 0x10000, scoped, tag = 'input window, operand 2, single buffered']
    #allocation9 [shape = 'u8[8192]{0}', space=vmem, size = 0x2000, scoped, tag = 'output window, operand 0, single buffered']
    %8 = vsyncpa [#allocation4], 0
    %9 = vsyncpa [#allocation7], 0
    %10 = vsyncpa [#allocation5], 0
    // Predicated region
    $region2: #{tpu_custom_call.1} parent=1 // pred_check
      _
    $region3: #{tpu_custom_call.1} parent=1 // pred_check_branch
      %12 = sbr.rel (0) target = $region5
    $region4: #{tpu_custom_call.1} parent=1 // pred_region
      %14 = vsyncadd [#allocation4], 0
      %s15 = sshll.u32 %s0, 4
      %s16 = int_to_ptr.hbm [resolvable:$true] %s15
      %s17 = sshll.u32 [#allocation3], 4
      %s18 = int_to_ptr.vmem [resolvable:$true] %s17
      %23 = dma.hbm_to_vmem [thread:$0]  %s16, 256, %s18, [#allocation4], 128, 128, 8
    $region5: #{tpu_custom_call.1} parent=1 // pred_fallthru
      _
    // Predicated region
    $region6: #{tpu_custom_call.1} parent=1 // pred_check
      _
    $region7: #{tpu_custom_call.1} parent=1 // pred_check_branch
      %25 = sbr.rel (0) target = $region9
    $region8: #{tpu_custom_call.1} parent=1 // pred_region
      %27 = vsyncadd [#allocation7], 0
      %s28 = sshll.u32 %s1, 4
      %s29 = int_to_ptr.hbm [resolvable:$true] %s28
      %s30 = sshll.u32 [#allocation6], 4
      %s31 = int_to_ptr.vmem [resolvable:$true] %s30
      %36 = dma.hbm_to_vmem [thread:$0]  %s29, 2048, %s31, [#allocation7], 128, 128, 8
    $region9: #{tpu_custom_call.1} parent=1 // pred_fallthru
      _
    // Predicated region
    $region10: #{tpu_custom_call.1} parent=1 // pred_check
      _
    $region11: #{tpu_custom_call.1} parent=1 // pred_check_branch
      %38 = sbr.rel (0) target = $region13
    $region12: #{tpu_custom_call.1} parent=1 // pred_region
      %40 = vsyncadd [#allocation7], 0
      %s41 = sshll.u32 %s2, 4
      %s42 = int_to_ptr.hbm [resolvable:$true] %s41
      %s43 = sshll.u32 [#allocation8], 4
      %s44 = int_to_ptr.vmem [resolvable:$true] %s43
      %49 = dma.hbm_to_vmem [thread:$0]  %s42, 2048, %s44, [#allocation7], 128, 128, 8
    $region13: #{tpu_custom_call.1} parent=1 // pred_fallthru
      _
    // Predicated region
    $region14: #{tpu_custom_call.1} parent=1 // pred_check
      _
    $region15: #{tpu_custom_call.1} parent=1 // pred_check_branch
      %51 = sbr.rel (0) target = $region17
    $region16: #{tpu_custom_call.1} parent=1 // pred_region
      %53 = dma.done [#allocation4], 256
    $region17: #{tpu_custom_call.1} parent=1 // pred_fallthru
      _
    // Predicated region
    $region18: #{tpu_custom_call.1} parent=1 // pred_check
      _
    $region19: #{tpu_custom_call.1} parent=1 // pred_check_branch
      %55 = sbr.rel (0) target = $region21
    $region20: #{tpu_custom_call.1} parent=1 // pred_region
      %57 = dma.done [#allocation7], 2048
    $region21: #{tpu_custom_call.1} parent=1 // pred_fallthru
      _
    // Predicated region
    $region22: #{tpu_custom_call.1} parent=1 // pred_check
      _
    $region23: #{tpu_custom_call.1} parent=1 // pred_check_branch
      %59 = sbr.rel (0) target = $region25
    $region24: #{tpu_custom_call.1} parent=1 // pred_region
      %61 = dma.done [#allocation7], 2048
    $region25: #{tpu_custom_call.1} parent=1 // pred_fallthru
      _
    %p62 = scmp.eq.s32.totalorder 0, 0
    // Predicated region
    $region26: #{tpu_custom_call.1} parent=1 // pred_check
      %p63 = pneg %p62
    $region27: #{tpu_custom_call.1} parent=1 // pred_check_branch
      %65 = sbr.rel (%p63) target = $region29
    $region28: #{tpu_custom_call.1} parent=1 // pred_region
      %v66 = vld [vmem:[#allocation3] sm:$0xff]
      %v67 = vld [vmem:[#allocation3 + $0x8] sm:$0xff]
      %v68 = vld [vmem:[#allocation6] sm:$0xff]
      %v69 = vld [vmem:[#allocation6 + $0x8] sm:$0xff]
      %v70 = vld [vmem:[#allocation6 + $0x10] sm:$0xff]
      %v71 = vld [vmem:[#allocation6 + $0x18] sm:$0xff]
      %v72 = vld [vmem:[#allocation6 + $0x20] sm:$0xff]
      %v73 = vld [vmem:[#allocation6 + $0x28] sm:$0xff]
      %v74 = vld [vmem:[#allocation6 + $0x30] sm:$0xff]
      %v75 = vld [vmem:[#allocation6 + $0x38] sm:$0xff]
      %v76 = vld [vmem:[#allocation6 + $0x40] sm:$0xff]
      %v77 = vld [vmem:[#allocation6 + $0x48] sm:$0xff]
      %v78 = vld [vmem:[#allocation6 + $0x50] sm:$0xff]
      %v79 = vld [vmem:[#allocation6 + $0x58] sm:$0xff]
      %v80 = vld [vmem:[#allocation6 + $0x60] sm:$0xff]
      %v81 = vld [vmem:[#allocation6 + $0x68] sm:$0xff]
      %v82 = vld [vmem:[#allocation6 + $0x70] sm:$0xff]
      %v83 = vld [vmem:[#allocation6 + $0x78] sm:$0xff]
      %84 = vmatpush.xpose.msra.mxu0 %v83
      %85 = vmatpush.xpose.msra.mxu0 %v82
      %86 = vmatpush.xpose.msra.mxu0 %v81
      %87 = vmatpush.xpose.msra.mxu0 %v80
      %88 = vmatpush.xpose.msra.mxu0 %v79
      %89 = vmatpush.xpose.msra.mxu0 %v78
      %90 = vmatpush.xpose.msra.mxu0 %v77
      %91 = vmatpush.xpose.msra.mxu0 %v76
      %92 = vmatpush.xpose.msra.mxu0 %v75
      %93 = vmatpush.xpose.msra.mxu0 %v74
      %94 = vmatpush.xpose.msra.mxu0 %v73
      %95 = vmatpush.xpose.msra.mxu0 %v72
      %96 = vmatpush.xpose.msra.mxu0 %v71
      %97 = vmatpush.xpose.msra.mxu0 %v70
      %98 = vmatpush.xpose.msra.mxu0 %v69
      %99 = vmatpush.xpose.msra.mxu0 %v68
      %100 = vmatmul.f32.gmra.mxu0 %v66
      %v101 = vpop.f32.mrf.mxu0
      %v102 = vadd.f32 0.0, %v101
      %103 = vmatmul.f32.gmra.mxu0 %v67
      %v104 = vpop.f32.mrf.mxu0
      %v105 = vadd.f32 0.0, %v104
      %106 = vdwg.mxu0
      %107 = vst [vmem:[#allocation2] sm:$0xff] %v102
      %108 = vst [vmem:[#allocation2 + $0x8] sm:$0xff] %v105
    $region29: #{tpu_custom_call.1} parent=1 // pred_fallthru
      _
    %v109 = vld [vmem:[#allocation2] sm:$0xff]
    %v110 = vld [vmem:[#allocation2 + $0x8] sm:$0xff]
    %v111 = vld [vmem:[#allocation8] sm:$0xff]
    %v112 = vld [vmem:[#allocation8 + $0x8] sm:$0xff]
    %v113 = vld [vmem:[#allocation8 + $0x10] sm:$0xff]
    %v114 = vld [vmem:[#allocation8 + $0x18] sm:$0xff]
    %v115 = vld [vmem:[#allocation8 + $0x20] sm:$0xff]
    %v116 = vld [vmem:[#allocation8 + $0x28] sm:$0xff]
    %v117 = vld [vmem:[#allocation8 + $0x30] sm:$0xff]
    %v118 = vld [vmem:[#allocation8 + $0x38] sm:$0xff]
    %v119 = vld [vmem:[#allocation8 + $0x40] sm:$0xff]
    %v120 = vld [vmem:[#allocation8 + $0x48] sm:$0xff]
    %v121 = vld [vmem:[#allocation8 + $0x50] sm:$0xff]
    %v122 = vld [vmem:[#allocation8 + $0x58] sm:$0xff]
    %v123 = vld [vmem:[#allocation8 + $0x60] sm:$0xff]
    %v124 = vld [vmem:[#allocation8 + $0x68] sm:$0xff]
    %v125 = vld [vmem:[#allocation8 + $0x70] sm:$0xff]
    %v126 = vld [vmem:[#allocation8 + $0x78] sm:$0xff]
    %127 = vmatpush.msra.mxu0 %v126
    %128 = vmatpush.msra.mxu0 %v125
    %129 = vmatpush.msra.mxu0 %v124
    %130 = vmatpush.msra.mxu0 %v123
    %131 = vmatpush.msra.mxu0 %v122
    %132 = vmatpush.msra.mxu0 %v121
    %133 = vmatpush.msra.mxu0 %v120
    %134 = vmatpush.msra.mxu0 %v119
    %135 = vmatpush.msra.mxu0 %v118
    %136 = vmatpush.msra.mxu0 %v117
    %137 = vmatpush.msra.mxu0 %v116
    %138 = vmatpush.msra.mxu0 %v115
    %139 = vmatpush.msra.mxu0 %v114
    %140 = vmatpush.msra.mxu0 %v113
    %141 = vmatpush.msra.mxu0 %v112
    %142 = vmatpush.msra.mxu0 %v111
    %143 = vmatmul.f32.gmra.mxu0 %v109
    %v144 = vpop.f32.mrf.mxu0
    %v145 = vadd.f32 0.0, %v144
    %146 = vmatmul.f32.gmra.mxu0 %v110
    %v147 = vpop.f32.mrf.mxu0
    %v148 = vadd.f32 0.0, %v147
    %149 = vdwg.mxu0
    %150 = vst [vmem:[#allocation9] sm:$0xff] %v145
    %151 = vst [vmem:[#allocation9 + $0x8] sm:$0xff] %v148
    // Predicated region
    $region30: #{tpu_custom_call.1} parent=1 // pred_check
      _
    $region31: #{tpu_custom_call.1} parent=1 // pred_check_branch
      %153 = sbr.rel (0) target = $region33
    $region32: #{tpu_custom_call.1} parent=1 // pred_region
      %155 = vsyncadd [#allocation5], 0
      %s156 = sshll.u32 [#allocation9], 4
      %s157 = int_to_ptr.vmem [resolvable:$true] %s156
      %s158 = sshll.u32 %s3, 4
      %s159 = int_to_ptr.hbm [resolvable:$true] %s158
      %164 = dma.vmem_to_hbm [thread:$0]  %s157, 256, %s159, [#allocation5], 128, 128, 8
    $region33: #{tpu_custom_call.1} parent=1 // pred_fallthru
      _
    // Predicated region
    $region34: #{tpu_custom_call.1} parent=1 // pred_check
      _
    $region35: #{tpu_custom_call.1} parent=1 // pred_check_branch
      %166 = sbr.rel (0) target = $region37
    $region36: #{tpu_custom_call.1} parent=1 // pred_region
      %168 = dma.done [#allocation5], 256
    $region37: #{tpu_custom_call.1} parent=1 // pred_fallthru
      _
    %169 = vsyncpa [#allocation4], 1
    %170 = vsyncpa [#allocation7], 1
    %171 = vsyncpa [#allocation5], 1

// kernel: tpu_custom_call.1
$region0: #{tpu_custom_call.1}
  #allocation0 [shape = 'u32[]', space=smem, size = 0x4, offset = 0x4, fixed_abs, tag = 'smem constant byte address 0x4 - core index']
  #allocation1 [shape = 'u32[72,128]{1,0:T(1,128)}', space=vmem, size = 0x9000, scoped, tag = 'internal scratch']
  #allocation2 [shape = 'f32[16,128]{1,0:T(8,128)}', space=vmem, size = 0x2000, scoped, tag = 'scratch operand']
  %s0 = inlined_call_operand.hbm [shape: f32[16,128], index: 0, kind: input, shape index: {}]
  %s1 = inlined_call_operand.hbm [shape: f32[128,128], index: 1, kind: input, shape index: {}]
  %s2 = inlined_call_operand.hbm [shape: f32[128,128], index: 2, kind: input, shape index: {}]
  %s3 = inlined_call_operand.hbm [shape: f32[16,128], index: 3, kind: output, shape index: {}]
  %s4 = sld [smem:[#allocation0]]
  $region38: #{tpu_custom_call.1} parent=0
    _
  %s6 = ssub.s32 1, %s4
  %s7 = scalar_select 0, %s6, %s4
  $region1: #{tpu_custom_call.1} parent=0
    #allocation3 [shape = 'u8[8192]{0}', space=vmem, size = 0x2000, scoped, tag = 'input window, operand 0, single buffered']
    #allocation4 [shape = 's32[1]{0}', space=sflag, size = 0x4, scoped, tag = 'scoped memory for tpu_custom_call.1']
    #allocation5 [shape = 's32[1]{0}', space=sflag, size = 0x4, scoped, tag = 'scoped memory for tpu_custom_call.1']
    #allocation6 [shape = 'u8[65536]{0}', space=vmem, size = 0x10000, scoped, tag = 'input window, operand 1, single buffered']
    #allocation7 [shape = 's32[1]{0}', space=sflag, size = 0x4, scoped, tag = 'scoped memory for tpu_custom_call.1']
    #allocation8 [shape = 'u8[65536]{0}', space=vmem, size = 0x10000, scoped, tag = 'input window, operand 2, single buffered']
    #allocation9 [shape = 'u8[8192]{0}', space=vmem, size = 0x2000, scoped, tag = 'output window, operand 0, single buffered']
    %8 = vsyncpa [#allocation4], 0
    %9 = vsyncpa [#allocation7], 0
    %10 = vsyncpa [#allocation5], 0
    // Predicated region
    $region2: #{tpu_custom_call.1} parent=1 // pred_check
      _
    $region3: #{tpu_custom_call.1} parent=1 // pred_check_branch
      %12 = sbr.rel (0) target = $region5
    $region4: #{tpu_custom_call.1} parent=1 // pred_region
      %14 = vsyncadd [#allocation4], 0
      %s15 = sshll.u32 %s0, 4
      %s16 = int_to_ptr.hbm [resolvable:$true] %s15
      %s17 = sshll.u32 [#allocation3], 4
      %s18 = int_to_ptr.vmem [resolvable:$true] %s17
      %23 = dma.hbm_to_vmem [thread:$0]  %s16, 256, %s18, [#allocation4], 128, 128, 8
    $region5: #{tpu_custom_call.1} parent=1 // pred_fallthru
      _
    // Predicated region
    $region6: #{tpu_custom_call.1} parent=1 // pred_check
      _
    $region7: #{tpu_custom_call.1} parent=1 // pred_check_branch
      %25 = sbr.rel (0) target = $region9
    $region8: #{tpu_custom_call.1} parent=1 // pred_region
      %27 = vsyncadd [#allocation7], 0
      %s28 = sshll.u32 %s1, 4
      %s29 = int_to_ptr.hbm [resolvable:$true] %s28
      %s30 = sshll.u32 [#allocation6], 4
      %s31 = int_to_ptr.vmem [resolvable:$true] %s30
      %36 = dma.hbm_to_vmem [thread:$0]  %s29, 2048, %s31, [#allocation7], 128, 128, 8
    $region9: #{tpu_custom_call.1} parent=1 // pred_fallthru
      _
    // Predicated region
    $region10: #{tpu_custom_call.1} parent=1 // pred_check
      _
    $region11: #{tpu_custom_call.1} parent=1 // pred_check_branch
      %38 = sbr.rel (0) target = $region13
    $region12: #{tpu_custom_call.1} parent=1 // pred_region
      %40 = vsyncadd [#allocation7], 0
      %s41 = sshll.u32 %s2, 4
      %s42 = int_to_ptr.hbm [resolvable:$true] %s41
      %s43 = sshll.u32 [#allocation8], 4
      %s44 = int_to_ptr.vmem [resolvable:$true] %s43
      %49 = dma.hbm_to_vmem [thread:$0]  %s42, 2048, %s44, [#allocation7], 128, 128, 8
    $region13: #{tpu_custom_call.1} parent=1 // pred_fallthru
      _
    // Predicated region
    $region14: #{tpu_custom_call.1} parent=1 // pred_check
      _
    $region15: #{tpu_custom_call.1} parent=1 // pred_check_branch
      %51 = sbr.rel (0) target = $region17
    $region16: #{tpu_custom_call.1} parent=1 // pred_region
      %53 = dma.done [#allocation4], 256
    $region17: #{tpu_custom_call.1} parent=1 // pred_fallthru
      _
    // Predicated region
    $region18: #{tpu_custom_call.1} parent=1 // pred_check
      _
    $region19: #{tpu_custom_call.1} parent=1 // pred_check_branch
      %55 = sbr.rel (0) target = $region21
    $region20: #{tpu_custom_call.1} parent=1 // pred_region
      %57 = dma.done [#allocation7], 2048
    $region21: #{tpu_custom_call.1} parent=1 // pred_fallthru
      _
    // Predicated region
    $region22: #{tpu_custom_call.1} parent=1 // pred_check
      _
    $region23: #{tpu_custom_call.1} parent=1 // pred_check_branch
      %59 = sbr.rel (0) target = $region25
    $region24: #{tpu_custom_call.1} parent=1 // pred_region
      %61 = dma.done [#allocation7], 2048
    $region25: #{tpu_custom_call.1} parent=1 // pred_fallthru
      _
    %p62 = scmp.eq.s32.totalorder 0, 0
    // Predicated region
    $region26: #{tpu_custom_call.1} parent=1 // pred_check
      %p63 = pneg %p62
    $region27: #{tpu_custom_call.1} parent=1 // pred_check_branch
      %65 = sbr.rel (%p63) target = $region29
    $region28: #{tpu_custom_call.1} parent=1 // pred_region
      %v66 = vld [vmem:[#allocation3] sm:$0xff]
      %v67 = vld [vmem:[#allocation3 + $0x8] sm:$0xff]
      %v68 = vld [vmem:[#allocation6] sm:$0xff]
      %v69 = vld [vmem:[#allocation6 + $0x8] sm:$0xff]
      %v70 = vld [vmem:[#allocation6 + $0x10] sm:$0xff]
      %v71 = vld [vmem:[#allocation6 + $0x18] sm:$0xff]
      %v72 = vld [vmem:[#allocation6 + $0x20] sm:$0xff]
      %v73 = vld [vmem:[#allocation6 + $0x28] sm:$0xff]
      %v74 = vld [vmem:[#allocation6 + $0x30] sm:$0xff]
      %v75 = vld [vmem:[#allocation6 + $0x38] sm:$0xff]
      %v76 = vld [vmem:[#allocation6 + $0x40] sm:$0xff]
      %v77 = vld [vmem:[#allocation6 + $0x48] sm:$0xff]
      %v78 = vld [vmem:[#allocation6 + $0x50] sm:$0xff]
      %v79 = vld [vmem:[#allocation6 + $0x58] sm:$0xff]
      %v80 = vld [vmem:[#allocation6 + $0x60] sm:$0xff]
      %v81 = vld [vmem:[#allocation6 + $0x68] sm:$0xff]
      %v82 = vld [vmem:[#allocation6 + $0x70] sm:$0xff]
      %v83 = vld [vmem:[#allocation6 + $0x78] sm:$0xff]
      %84 = vmatpush.xpose.msra.mxu0 %v83
      %85 = vmatpush.xpose.msra.mxu0 %v82
      %86 = vmatpush.xpose.msra.mxu0 %v81
      %87 = vmatpush.xpose.msra.mxu0 %v80
      %88 = vmatpush.xpose.msra.mxu0 %v79
      %89 = vmatpush.xpose.msra.mxu0 %v78
      %90 = vmatpush.xpose.msra.mxu0 %v77
      %91 = vmatpush.xpose.msra.mxu0 %v76
      %92 = vmatpush.xpose.msra.mxu0 %v75
      %93 = vmatpush.xpose.msra.mxu0 %v74
      %94 = vmatpush.xpose.msra.mxu0 %v73
      %95 = vmatpush.xpose.msra.mxu0 %v72
      %96 = vmatpush.xpose.msra.mxu0 %v71
      %97 = vmatpush.xpose.msra.mxu0 %v70
      %98 = vmatpush.xpose.msra.mxu0 %v69
      %99 = vmatpush.xpose.msra.mxu0 %v68
      %100 = vmatmul.f32.gmra.mxu0 %v66
      %v101 = vpop.f32.mrf.mxu0
      %v102 = vadd.f32 0.0, %v101
      %103 = vmatmul.f32.gmra.mxu0 %v67
      %v104 = vpop.f32.mrf.mxu0
      %v105 = vadd.f32 0.0, %v104
      %106 = vdwg.mxu0
      %107 = vst [vmem:[#allocation2] sm:$0xff] %v102
      %108 = vst [vmem:[#allocation2 + $0x8] sm:$0xff] %v105
    $region29: #{tpu_custom_call.1} parent=1 // pred_fallthru
      _
    %v109 = vld [vmem:[#allocation2] sm:$0xff]
    %v110 = vld [vmem:[#allocation2 + $0x8] sm:$0xff]
    %v111 = vld [vmem:[#allocation8] sm:$0xff]
    %v112 = vld [vmem:[#allocation8 + $0x8] sm:$0xff]
    %v113 = vld [vmem:[#allocation8 + $0x10] sm:$0xff]
    %v114 = vld [vmem:[#allocation8 + $0x18] sm:$0xff]
    %v115 = vld [vmem:[#allocation8 + $0x20] sm:$0xff]
    %v116 = vld [vmem:[#allocation8 + $0x28] sm:$0xff]
    %v117 = vld [vmem:[#allocation8 + $0x30] sm:$0xff]
    %v118 = vld [vmem:[#allocation8 + $0x38] sm:$0xff]
    %v119 = vld [vmem:[#allocation8 + $0x40] sm:$0xff]
    %v120 = vld [vmem:[#allocation8 + $0x48] sm:$0xff]
    %v121 = vld [vmem:[#allocation8 + $0x50] sm:$0xff]
    %v122 = vld [vmem:[#allocation8 + $0x58] sm:$0xff]
    %v123 = vld [vmem:[#allocation8 + $0x60] sm:$0xff]
    %v124 = vld [vmem:[#allocation8 + $0x68] sm:$0xff]
    %v125 = vld [vmem:[#allocation8 + $0x70] sm:$0xff]
    %v126 = vld [vmem:[#allocation8 + $0x78] sm:$0xff]
    %127 = vmatpush.msra.mxu0 %v126
    %128 = vmatpush.msra.mxu0 %v125
    %129 = vmatpush.msra.mxu0 %v124
    %130 = vmatpush.msra.mxu0 %v123
    %131 = vmatpush.msra.mxu0 %v122
    %132 = vmatpush.msra.mxu0 %v121
    %133 = vmatpush.msra.mxu0 %v120
    %134 = vmatpush.msra.mxu0 %v119
    %135 = vmatpush.msra.mxu0 %v118
    %136 = vmatpush.msra.mxu0 %v117
    %137 = vmatpush.msra.mxu0 %v116
    %138 = vmatpush.msra.mxu0 %v115
    %139 = vmatpush.msra.mxu0 %v114
    %140 = vmatpush.msra.mxu0 %v113
    %141 = vmatpush.msra.mxu0 %v112
    %142 = vmatpush.msra.mxu0 %v111
    %143 = vmatmul.f32.gmra.mxu0 %v109
    %v144 = vpop.f32.mrf.mxu0
    %v145 = vadd.f32 0.0, %v144
    %146 = vmatmul.f32.gmra.mxu0 %v110
    %v147 = vpop.f32.mrf.mxu0
    %v148 = vadd.f32 0.0, %v147
    %149 = vdwg.mxu0
    %150 = vst [vmem:[#allocation9] sm:$0xff] %v145
    %151 = vst [vmem:[#allocation9 + $0x8] sm:$0xff] %v148
    // Predicated region
    $region30: #{tpu_custom_call.1} parent=1 // pred_check
      _
    $region31: #{tpu_custom_call.1} parent=1 // pred_check_branch
      %153 = sbr.rel (0) target = $region33
    $region32: #{tpu_custom_call.1} parent=1 // pred_region
      %155 = vsyncadd [#allocation5], 0
      %s156 = sshll.u32 [#allocation9], 4
      %s157 = int_to_ptr.vmem [resolvable:$true] %s156
      %s158 = sshll.u32 %s3, 4
      %s159 = int_to_ptr.hbm [resolvable:$true] %s158
      %164 = dma.vmem_to_hbm [thread:$0]  %s157, 256, %s159, [#allocation5], 128, 128, 8
    $region33: #{tpu_custom_call.1} parent=1 // pred_fallthru
      _
    // Predicated region
    $region34: #{tpu_custom_call.1} parent=1 // pred_check
      _
    $region35: #{tpu_custom_call.1} parent=1 // pred_check_branch
      %166 = sbr.rel (0) target = $region37
    $region36: #{tpu_custom_call.1} parent=1 // pred_region
      %168 = dma.done [#allocation5], 256
    $region37: #{tpu_custom_call.1} parent=1 // pred_fallthru
      _
    %169 = vsyncpa [#allocation4], 1
    %170 = vsyncpa [#allocation7], 1
    %171 = vsyncpa [#allocation5], 1

</llo_original>
